<compile_context>
chip_gen: v7x
topology: tpu7x:2x2x1
jax: 0.10.0
libtpu: 0.0.40
codegen_flags: <defaults>
</compile_context>

<pallas_src>
import jax
import jax.numpy as jnp
from jax.experimental import pallas as pl
from jax.experimental.pallas import tpu as pltpu

LANE = 128
SUBLANE = 8


def _round_up(n, m):
    return ((n + m - 1) // m) * m


def _mlp_kernel(x_ref, w1_ref, b1_ref, w2_ref, b2_ref, w3_ref, b3_ref, o_ref):
    x = x_ref[...]                                              # (tile, F) bf16
    # Layer 1: Linear (BN + bias pre-folded into w1/b1) + ReLU (+ Dropout = id)
    h = jnp.dot(x, w1_ref[...], preferred_element_type=jnp.float32) + b1_ref[...]
    h = jnp.maximum(h, 0.0)
    # Layer 2: Linear (BN + bias pre-folded) + ReLU (+ Dropout = id)
    h = jnp.dot(h.astype(jnp.bfloat16), w2_ref[...],
                preferred_element_type=jnp.float32) + b2_ref[...]
    h = jnp.maximum(h, 0.0)
    # Output head Linear(hidden_size_2, 1): weighted lane reduction (VPU+XLU),
    # writes a skinny (tile, 1) column -> no dead output columns to HBM.
    o = jnp.sum(h * w3_ref[...], axis=-1, keepdims=True) + b3_ref[...]
    o_ref[...] = o.astype(o_ref.dtype)


def _choose_tiling(batch, tile_max=2048):
    """Return (padded_batch, tile, n_tiles) with bounded padding waste.

    <=128 rows: single whole-array block (gridless).  Otherwise: at least 2
    (an even number of) tiles so v7x's two TensorCores both get work, tile
    capped at `tile_max` rows, rows padded only to a sublane multiple per tile.
    """
    bp8 = _round_up(max(batch, 1), SUBLANE)
    if bp8 <= 128:
        return bp8, bp8, 1
    n_tiles = max(2, -(-bp8 // tile_max))
    if n_tiles % 2:
        n_tiles += 1
    tile = _round_up(-(-bp8 // n_tiles), SUBLANE)
    return n_tiles * tile, tile, n_tiles


def simple_mlp_forward(x, prepared, tile_max=2048):
    """Full MLP forward in one Pallas call (gridless for tiny batch,
    batch-tiled "parallel" grid otherwise)."""
    w1, b1, w2, b2, w3, b3 = prepared
    B, F = x.shape
    assert F == w1.shape[0], "input feature dim must match prepared w1"

    bp, tile, n_tiles = _choose_tiling(B, tile_max)
    xp = x.astype(jnp.bfloat16)
    if bp != B:
        xp = jnp.pad(xp, ((0, bp - B), (0, 0)))

    h1p = w1.shape[1]
    h2p = w2.shape[1]
    flops = 2 * bp * (F * h1p + h1p * h2p + h2p)
    bytes_accessed = (xp.size * 2                       # bf16 input
                      + (w1.size + w2.size) * 2         # bf16 weights
                      + (b1.size + b2.size + w3.size + b3.size) * 4
                      + bp * 4)                         # f32 skinny output
    ce = pl.CostEstimate(flops=flops, transcendentals=0,
                         bytes_accessed=bytes_accessed)

    if n_tiles == 1:
        # Tiny batch: no grid machinery; every operand is a whole-array block.
        yp = pl.pallas_call(
            _mlp_kernel,
            out_shape=jax.ShapeDtypeStruct((bp, 1), jnp.float32),
            cost_estimate=ce,
        )(xp, w1, b1, w2, b2, w3, b3)
    else:
        def whole(a):
            return pl.BlockSpec(a.shape, lambda i: (0, 0))

        yp = pl.pallas_call(
            _mlp_kernel,
            out_shape=jax.ShapeDtypeStruct((bp, 1), jnp.float32),
            grid=(n_tiles,),
            in_specs=[
                pl.BlockSpec((tile, F), lambda i: (i, 0)),   # x: batch-tiled
                whole(w1), whole(b1),                        # resident weights
                whole(w2), whole(b2),
                whole(w3), whole(b3),
            ],
            out_specs=pl.BlockSpec((tile, 1), lambda i: (i, 0)),
            compiler_params=pltpu.CompilerParams(
                dimension_semantics=("parallel",),
                vmem_limit_bytes=32 * 1024 * 1024),
            cost_estimate=ce,
        )(xp, w1, b1, w2, b2, w3, b3)

    return yp[:B]


def init_raw_params(key, input_size, hidden_size_1, hidden_size_2):
    """PyTorch-style synthetic parameters for SimpleMLP (eval mode)."""
    ks = jax.random.split(key, 14)

    def linear(kw, kb, fan_in, fan_out):
        bound = 1.0 / jnp.sqrt(fan_in)
        w = jax.random.uniform(kw, (fan_out, fan_in), jnp.float32, -bound, bound)
        b = jax.random.uniform(kb, (fan_out,), jnp.float32, -bound, bound)
        return w, b

    def bn(kg, kb2, km, kv, n):
        gamma = 1.0 + 0.1 * jax.random.normal(kg, (n,), jnp.float32)
        beta = 0.1 * jax.random.normal(kb2, (n,), jnp.float32)
        mean = 0.1 * jax.random.normal(km, (n,), jnp.float32)
        var = jax.random.uniform(kv, (n,), jnp.float32, 0.5, 1.5)
        return gamma, beta, mean, var

    w1, b1 = linear(ks[0], ks[1], input_size, hidden_size_1)
    g1, be1, m1, v1 = bn(ks[2], ks[3], ks[4], ks[5], hidden_size_1)
    w2, b2 = linear(ks[6], ks[7], hidden_size_1, hidden_size_2)
    g2, be2, m2, v2 = bn(ks[8], ks[9], ks[10], ks[11], hidden_size_2)
    w3, b3 = linear(ks[12], ks[13], hidden_size_2, 1)
    return dict(w1=w1, b1=b1, g1=g1, be1=be1, m1=m1, v1=v1,
                w2=w2, b2=b2, g2=g2, be2=be2, m2=m2, v2=v2,
                w3=w3, b3=b3)


def prepare_params(raw, eps=1e-5):
    """Transpose to [in, out], fold eval-mode BN + bias into the weights,
    lane-pad hidden dims only (input feature dim stays unpadded), store big
    weights in bf16, biases in f32, and the 1-wide head as a f32 row vector."""
    def fold(w, b, gamma, beta, mean, var):
        scale = gamma / jnp.sqrt(var + eps)          # [out]
        w_f = w.T * scale[None, :]                   # [in, out]
        b_f = (b - mean) * scale + beta              # [out]
        return w_f, b_f

    w1f, b1f = fold(raw["w1"], raw["b1"], raw["g1"], raw["be1"], raw["m1"], raw["v1"])
    w2f, b2f = fold(raw["w2"], raw["b2"], raw["g2"], raw["be2"], raw["m2"], raw["v2"])

    h1, h2 = w1f.shape[1], w2f.shape[1]
    h1p, h2p = _round_up(h1, LANE), _round_up(h2, LANE)

    w1p = jnp.pad(w1f, ((0, 0), (0, h1p - h1))).astype(jnp.bfloat16)
    b1p = jnp.pad(b1f, ((0, h1p - h1),))[None, :].astype(jnp.float32)
    w2p = jnp.pad(w2f, ((0, h1p - h1), (0, h2p - h2))).astype(jnp.bfloat16)
    b2p = jnp.pad(b2f, ((0, h2p - h2),))[None, :].astype(jnp.float32)
    # Head: (1, h2p) f32 row used as a lane reduction in-kernel (no N=1 matmul,
    # no padded output columns).
    w3row = jnp.pad(raw["w3"], ((0, 0), (0, h2p - h2))).astype(jnp.float32)
    b3p = raw["b3"].reshape(1, 1).astype(jnp.float32)
    return (w1p, b1p, w2p, b2p, w3row, b3p)


def reference_forward(x, raw, eps=1e-5):
    """Pure-JAX f32 eval-mode reference matching the PyTorch module."""
    h = x @ raw["w1"].T + raw["b1"]
    h = (h - raw["m1"]) / jnp.sqrt(raw["v1"] + eps) * raw["g1"] + raw["be1"]
    h = jnp.maximum(h, 0.0)           # Dropout (eval) = identity
    h = h @ raw["w2"].T + raw["b2"]
    h = (h - raw["m2"]) / jnp.sqrt(raw["v2"] + eps) * raw["g2"] + raw["be2"]
    h = jnp.maximum(h, 0.0)
    return h @ raw["w3"].T + raw["b3"]


def reference_forward_prepared(x, prepared):
    """Pure-JAX reference at the kernel's precision (bf16 matmul inputs,
    f32 accumulation) for a tight numerical check."""
    w1, b1, w2, b2, w3, b3 = prepared
    h = jnp.dot(x.astype(jnp.bfloat16), w1,
                preferred_element_type=jnp.float32) + b1
    h = jnp.maximum(h, 0.0)
    h = jnp.dot(h.astype(jnp.bfloat16), w2,
                preferred_element_type=jnp.float32) + b2
    h = jnp.maximum(h, 0.0)
    return jnp.sum(h * w3, axis=-1, keepdims=True) + b3


if __name__ == "__main__":
    input_size, hidden_size_1, hidden_size_2 = 32, 64, 32
    # dropout_rate is irrelevant in eval mode (identity).
    # TODO(synk): training-mode BatchNorm (batch statistics) and Dropout masks
    # are not implemented; this kernel reproduces eval-mode forward semantics.

    key = jax.random.PRNGKey(0)
    k_x1, k_x2, k_p = jax.random.split(key, 3)
    raw = init_raw_params(k_p, input_size, hidden_size_1, hidden_size_2)
    prepared = prepare_params(raw)

    # Small batch -> gridless path (whole problem resident in VMEM).
    x_small = jax.random.normal(k_x1, (8, input_size), jnp.float32)
    out_small = jax.block_until_ready(simple_mlp_forward(x_small, prepared))
    assert out_small.shape == (8, 1), out_small.shape
    assert jnp.allclose(out_small, reference_forward_prepared(x_small, prepared),
                        atol=2e-3, rtol=2e-3), "small-batch mismatch (bf16 ref)"
    assert jnp.allclose(out_small, reference_forward(x_small, raw),
                        atol=1e-1, rtol=1e-1), "small-batch mismatch (f32 ref)"

    # Larger, awkward batch -> adaptive 2-tile "parallel" grid path
    # (B=600 -> tile=304, bp=608: 8 padded rows instead of 424 previously).
    x_big = jax.random.normal(k_x2, (600, input_size), jnp.float32)
    out_big = jax.block_until_ready(simple_mlp_forward(x_big, prepared))
    assert out_big.shape == (600, 1), out_big.shape
    assert jnp.allclose(out_big, reference_forward_prepared(x_big, prepared),
                        atol=2e-3, rtol=2e-3), "tiled-batch mismatch (bf16 ref)"
    assert jnp.allclose(out_big, reference_forward(x_big, raw),
                        atol=1e-1, rtol=1e-1), "tiled-batch mismatch (f32 ref)"

    print("KERNEL_OK")
</pallas_src>

<mosaic_0001>
module attributes {stable_mosaic.version = 11 : i64} {
  func.func @_mlp_kernel(%arg0: memref<8x32xbf16, #tpu.memory_space<vmem>>, %arg1: memref<32x128xbf16, #tpu.memory_space<vmem>>, %arg2: memref<1x128xf32, #tpu.memory_space<vmem>>, %arg3: memref<128x128xbf16, #tpu.memory_space<vmem>>, %arg4: memref<1x128xf32, #tpu.memory_space<vmem>>, %arg5: memref<1x128xf32, #tpu.memory_space<vmem>>, %arg6: memref<1x1xf32, #tpu.memory_space<vmem>>, %arg7: memref<8x1xf32, #tpu.memory_space<vmem>>) attributes {dimension_semantics = [], scalar_prefetch = 0 : i64, scratch_operands = 0 : i64, tpu.core_type = #tpu.core_type<tc>} {
    %c0 = arith.constant 0 : index
    %c0_0 = arith.constant 0 : index
    %0 = vector.load %arg0[%c0, %c0_0] : memref<8x32xbf16, #tpu.memory_space<vmem>>, vector<8x32xbf16>
    %c0_1 = arith.constant 0 : index
    %c0_2 = arith.constant 0 : index
    %1 = vector.load %arg1[%c0_1, %c0_2] : memref<32x128xbf16, #tpu.memory_space<vmem>>, vector<32x128xbf16>
    %cst = arith.constant dense<0.000000e+00> : vector<8x128xf32>
    %2 = tpu.matmul %0, %1, %cst {dimension_numbers = #tpu.dot_dimension_numbers<[1], [0], [0], [1], [0, 0, 1, 1], [], []>} : vector<8x32xbf16>, vector<32x128xbf16>, vector<8x128xf32> -> vector<8x128xf32>
    %c0_3 = arith.constant 0 : index
    %c0_4 = arith.constant 0 : index
    %3 = vector.load %arg2[%c0_3, %c0_4] : memref<1x128xf32, #tpu.memory_space<vmem>>, vector<1x128xf32>
    %4 = vector.broadcast %3 : vector<1x128xf32> to vector<8x128xf32>
    %5 = arith.addf %2, %4 : vector<8x128xf32>
    %cst_5 = arith.constant 0.000000e+00 : f32
    %6 = vector.broadcast %cst_5 : f32 to vector<8x128xf32>
    %7 = arith.maximumf %5, %6 : vector<8x128xf32>
    %8 = arith.truncf %7 : vector<8x128xf32> to vector<8x128xbf16>
    %c0_6 = arith.constant 0 : index
    %c0_7 = arith.constant 0 : index
    %9 = vector.load %arg3[%c0_6, %c0_7] : memref<128x128xbf16, #tpu.memory_space<vmem>>, vector<128x128xbf16>
    %cst_8 = arith.constant dense<0.000000e+00> : vector<8x128xf32>
    %10 = tpu.matmul %8, %9, %cst_8 {dimension_numbers = #tpu.dot_dimension_numbers<[1], [0], [0], [1], [0, 0, 1, 1], [], []>} : vector<8x128xbf16>, vector<128x128xbf16>, vector<8x128xf32> -> vector<8x128xf32>
    %c0_9 = arith.constant 0 : index
    %c0_10 = arith.constant 0 : index
    %11 = vector.load %arg4[%c0_9, %c0_10] : memref<1x128xf32, #tpu.memory_space<vmem>>, vector<1x128xf32>
    %12 = vector.broadcast %11 : vector<1x128xf32> to vector<8x128xf32>
    %13 = arith.addf %10, %12 : vector<8x128xf32>
    %cst_11 = arith.constant 0.000000e+00 : f32
    %14 = vector.broadcast %cst_11 : f32 to vector<8x128xf32>
    %15 = arith.maximumf %13, %14 : vector<8x128xf32>
    %c0_12 = arith.constant 0 : index
    %c0_13 = arith.constant 0 : index
    %16 = vector.load %arg5[%c0_12, %c0_13] : memref<1x128xf32, #tpu.memory_space<vmem>>, vector<1x128xf32>
    %17 = vector.broadcast %16 : vector<1x128xf32> to vector<8x128xf32>
    %18 = arith.mulf %15, %17 : vector<8x128xf32>
    %cst_14 = arith.constant dense<0.000000e+00> : vector<8xf32>
    %19 = vector.multi_reduction <add>, %18, %cst_14 [1] : vector<8x128xf32> to vector<8xf32>
    %20 = vector.shape_cast %19 : vector<8xf32> to vector<8x1xf32>
    %c0_15 = arith.constant 0 : index
    %c0_16 = arith.constant 0 : index
    %21 = vector.load %arg6[%c0_15, %c0_16] : memref<1x1xf32, #tpu.memory_space<vmem>>, vector<1x1xf32>
    %22 = vector.broadcast %21 : vector<1x1xf32> to vector<8x1xf32>
    %23 = arith.addf %20, %22 : vector<8x1xf32>
    %c0_17 = arith.constant 0 : index
    %c0_18 = arith.constant 0 : index
    %24 = vector.load %arg7[%c0_17, %c0_18] : memref<8x1xf32, #tpu.memory_space<vmem>>, vector<8x1xf32>
    tpu.vector_store %arg7[%c0_17, %c0_18], %23 {strides = array<i32>} : memref<8x1xf32, #tpu.memory_space<vmem>>, vector<8x1xf32>,
    return
  }
}

</mosaic_0001>

<llo_original>
// kernel: tpu_custom_call.1
$region0: #{tpu_custom_call.1}
  #allocation0 [shape = 'u32[]', space=smem, size = 0x4, offset = 0x4, fixed_abs, tag = 'smem constant byte address 0x4 - core index']
  #allocation1 [shape = 'u32[144,128]{1,0:T(1,128)}', space=vmem, size = 0x12000, scoped, tag = 'internal scratch']
  #allocation2 [shape = 'f32[1,1]{1,0:T(1,128)S(1)}', space=vmem, size = 0x200, scoped, tag = 'scoped memory for tpu_custom_call.1']
  %s0 = inlined_call_operand.hbm [shape: bf16[8,32], index: 0, kind: input, shape index: {}]
  %s1 = inlined_call_operand.hbm [shape: bf16[32,128], index: 1, kind: input, shape index: {}]
  %s2 = inlined_call_operand.vmem [shape: f32[1,128], index: 2, kind: input, shape index: {}]
  %s3 = inlined_call_operand.hbm [shape: bf16[128,128], index: 3, kind: input, shape index: {}]
  %s4 = inlined_call_operand.vmem [shape: f32[1,128], index: 4, kind: input, shape index: {}]
  %s5 = inlined_call_operand.vmem [shape: f32[1,128], index: 5, kind: input, shape index: {}]
  %s6 = inlined_call_operand.<no memory space> [shape: f32[1,1], index: 6, kind: input, shape index: {}]
  %s7 = inlined_call_operand.vmem [shape: f32[8,1], index: 7, kind: output, shape index: {}]
  %s8 = sld [smem:[#allocation0]]
  $region50: #{tpu_custom_call.1} parent=0
    _
  %s10 = ssub.s32 1, %s8
  %s11 = scalar_select 0, %s10, %s8
  %v12 = vstv %s6
  %13 = vst [vmem:[#allocation2] sm:$0x1] %v12
  $region1: #{tpu_custom_call.1} parent=0
    #allocation3 [shape = 'u8[2048]{0}', space=vmem, size = 0x800, scoped, tag = 'input window, operand 0, single buffered']
    #allocation4 [shape = 's32[1]{0}', space=sflag, size = 0x4, scoped, tag = 'scoped memory for tpu_custom_call.1']
    #allocation5 [shape = 'u8[8192]{0}', space=vmem, size = 0x2000, scoped, tag = 'input window, operand 1, single buffered']
    #allocation6 [shape = 's32[1]{0}', space=sflag, size = 0x4, scoped, tag = 'scoped memory for tpu_custom_call.1']
    #allocation7 [shape = 'u8[32768]{0}', space=vmem, size = 0x8000, scoped, tag = 'input window, operand 3, single buffered']
    %14 = vsyncpa [#allocation4], 0
    %15 = vsyncpa [#allocation6], 0
    // Predicated region
    $region2: #{tpu_custom_call.1} parent=1 // pred_check
      _
    $region3: #{tpu_custom_call.1} parent=1 // pred_check_branch
      %17 = sbr.rel (0) target = $region5
    $region4: #{tpu_custom_call.1} parent=1 // pred_region
      %s19 = ssub.s32 64, 64
      %20 = vsyncadd [#allocation4], %s19
      %s22 = sshll.u32 [#allocation3], 4
      %s23 = int_to_ptr.vmem [resolvable:$true] %s22
      %25 = dma.hbm_to_vmem [thread:$0]  %s0, 64, %s23, [#allocation4]
    $region5: #{tpu_custom_call.1} parent=1 // pred_fallthru
      _
    // Predicated region
    $region6: #{tpu_custom_call.1} parent=1 // pred_check
      _
    $region7: #{tpu_custom_call.1} parent=1 // pred_check_branch
      %27 = sbr.rel (0) target = $region9
    $region8: #{tpu_custom_call.1} parent=1 // pred_region
      %s29 = ssub.s32 256, 256
      %30 = vsyncadd [#allocation6], %s29
      %s31 = sshll.u32 [#allocation5], 4
      %s32 = int_to_ptr.vmem [resolvable:$true] %s31
      %37 = dma.hbm_to_vmem [thread:$0]  %s1, 256, %s32, [#allocation6], 64, 64, 4
    $region9: #{tpu_custom_call.1} parent=1 // pred_fallthru
      _
    // Predicated region
    $region10: #{tpu_custom_call.1} parent=1 // pred_check
      _
    $region11: #{tpu_custom_call.1} parent=1 // pred_check_branch
      %39 = sbr.rel (0) target = $region13
    $region12: #{tpu_custom_call.1} parent=1 // pred_region
      _
    $region13: #{tpu_custom_call.1} parent=1 // pred_fallthru
      _
    // Predicated region
    $region14: #{tpu_custom_call.1} parent=1 // pred_check
      _
    $region15: #{tpu_custom_call.1} parent=1 // pred_check_branch
      %41 = sbr.rel (0) target = $region17
    $region16: #{tpu_custom_call.1} parent=1 // pred_region
      %s43 = ssub.s32 1024, 1024
      %44 = vsyncadd [#allocation6], %s43
      %s45 = sshll.u32 [#allocation7], 4
      %s46 = int_to_ptr.vmem [resolvable:$true] %s45
      %51 = dma.hbm_to_vmem [thread:$0]  %s3, 1024, %s46, [#allocation6], 64, 64, 4
    $region17: #{tpu_custom_call.1} parent=1 // pred_fallthru
      _
    // Predicated region
    $region18: #{tpu_custom_call.1} parent=1 // pred_check
      _
    $region19: #{tpu_custom_call.1} parent=1 // pred_check_branch
      %53 = sbr.rel (0) target = $region21
    $region20: #{tpu_custom_call.1} parent=1 // pred_region
      _
    $region21: #{tpu_custom_call.1} parent=1 // pred_fallthru
      _
    // Predicated region
    $region22: #{tpu_custom_call.1} parent=1 // pred_check
      _
    $region23: #{tpu_custom_call.1} parent=1 // pred_check_branch
      %55 = sbr.rel (0) target = $region25
    $region24: #{tpu_custom_call.1} parent=1 // pred_region
      _
    $region25: #{tpu_custom_call.1} parent=1 // pred_fallthru
      _
    // Predicated region
    $region26: #{tpu_custom_call.1} parent=1 // pred_check
      _
    $region27: #{tpu_custom_call.1} parent=1 // pred_check_branch
      %57 = sbr.rel (0) target = $region29
    $region28: #{tpu_custom_call.1} parent=1 // pred_region
      _
    $region29: #{tpu_custom_call.1} parent=1 // pred_fallthru
      _
    // Predicated region
    $region30: #{tpu_custom_call.1} parent=1 // pred_check
      _
    $region31: #{tpu_custom_call.1} parent=1 // pred_check_branch
      %59 = sbr.rel (0) target = $region33
    $region32: #{tpu_custom_call.1} parent=1 // pred_region
      %60 = dma.done [#allocation4], 64
    $region33: #{tpu_custom_call.1} parent=1 // pred_fallthru
      _
    // Predicated region
    $region34: #{tpu_custom_call.1} parent=1 // pred_check
      _
    $region35: #{tpu_custom_call.1} parent=1 // pred_check_branch
      %62 = sbr.rel (0) target = $region37
    $region36: #{tpu_custom_call.1} parent=1 // pred_region
      %63 = dma.done [#allocation6], 256
    $region37: #{tpu_custom_call.1} parent=1 // pred_fallthru
      _
    // Predicated region
    $region38: #{tpu_custom_call.1} parent=1 // pred_check
      _
    $region39: #{tpu_custom_call.1} parent=1 // pred_check_branch
      %65 = sbr.rel (0) target = $region41
    $region40: #{tpu_custom_call.1} parent=1 // pred_region
      %66 = dma.done [#allocation6], 1024
    $region41: #{tpu_custom_call.1} parent=1 // pred_fallthru
      _
    %v68 = vld [vmem:[#allocation3] sm:$0xf]
    %v69 = vld [vmem:[#allocation5] sm:$0xf]
    %v70 = vld [vmem:[#allocation5 + $0x4] sm:$0xf]
    %v71 = vld [vmem:[#allocation5 + $0x8] sm:$0xf]
    %v72 = vld [vmem:[#allocation5 + $0xc] sm:$0xf]
    %v73 = vld [vmem:[%s2] sm:$0x1]
    %v75 = vlaneseq
    %v76 = vshrl.u32 %v75, 7
    %v77 = vsub.s32 0, %v76
    %v78 = vrot.slane %v73, %v77
    %v84 = vunpack.c.l.b16 %v69
    %v85 = vunpack.c.l.b16 %v70
    %v86 = vunpack.c.l.b16 %v71
    %v87 = vunpack.c.l.b16 %v72
    %v88 = vpack.c.b16 %v85, %v84
    %v89 = vpack.c.b16 %v87, %v86
    %vm92 = vcmask 261120
    %v94 = vsel %vm92, %v68, 0
    %96 = vmatprep.subr.bf16.mxu0 0
    %97 = vmatpush1.bf16.msra.mxu0 %v88
    %98 = vmatprep.subr.bf16.mxu0 0
    %99 = vmatpush1.bf16.msra.mxu0 %v89
    %100 = vmatprep.subr.bf16.mxu0 0
    %101 = vmatpush1.bf16.msra.mxu0 0
    %102 = vmatprep.subr.bf16.mxu0 0
    %103 = vmatpush1.bf16.msra.mxu0 0
    %104 = vmatprep.subr.bf16.mxu0 0
    %105 = vmatpush1.bf16.msra.mxu0 0
    %106 = vmatprep.subr.bf16.mxu0 0
    %107 = vmatpush1.bf16.msra.mxu0 0
    %108 = vmatprep.subr.bf16.mxu0 0
    %109 = vmatpush1.bf16.msra.mxu0 0
    %110 = vmatprep.subr.bf16.mxu0 0
    %111 = vmatpush1.bf16.msra.mxu0 0
    %112 = vmatprep.subr.bf16.mxu0 0
    %113 = vmatpush1.bf16.msra.mxu0 0
    %114 = vmatprep.subr.bf16.mxu0 0
    %115 = vmatpush1.bf16.msra.mxu0 0
    %116 = vmatprep.subr.bf16.mxu0 0
    %117 = vmatpush1.bf16.msra.mxu0 0
    %118 = vmatprep.subr.bf16.mxu0 0
    %119 = vmatpush1.bf16.msra.mxu0 0
    %120 = vmatprep.subr.bf16.mxu0 0
    %121 = vmatpush1.bf16.msra.mxu0 0
    %122 = vmatprep.subr.bf16.mxu0 0
    %123 = vmatpush1.bf16.msra.mxu0 0
    %124 = vmatprep.subr.bf16.mxu0 0
    %125 = vmatpush1.bf16.msra.mxu0 0
    %126 = vmatprep.subr.bf16.mxu0 0
    %127 = vmatpush1.bf16.msra.mxu0 0
    %128 = vmatprep.mubr.bf16.mxu0 0
    %129 = vmatmul.mubr.bf16.gmra.mrb[0].mxu0 %v94
    %v130 = vpop.f32.mrb[0].mxu0
    %v131 = vadd.f32 %v78, %v130
    %v132 = vpop.f32.mrb[0].mxu0
    %v133 = vpop.f32.mrb[0].mxu0
    %v134 = vpop.f32.mrb[0].mxu0
    %135 = vdwg.mxu0
    %v136 = vmax.f32 %v131, 0.0
    %v137 = vpack.c.bf16 %v136, %v136
    %v138 = vld [vmem:[#allocation7] sm:$0xf]
    %v139 = vld [vmem:[#allocation7 + $0x4] sm:$0xf]
    %v140 = vld [vmem:[#allocation7 + $0x8] sm:$0xf]
    %v141 = vld [vmem:[#allocation7 + $0xc] sm:$0xf]
    %v142 = vld [vmem:[#allocation7 + $0x10] sm:$0xf]
    %v143 = vld [vmem:[#allocation7 + $0x14] sm:$0xf]
    %v144 = vld [vmem:[#allocation7 + $0x18] sm:$0xf]
    %v145 = vld [vmem:[#allocation7 + $0x1c] sm:$0xf]
    %v146 = vld [vmem:[#allocation7 + $0x20] sm:$0xf]
    %v147 = vld [vmem:[#allocation7 + $0x24] sm:$0xf]
    %v148 = vld [vmem:[#allocation7 + $0x28] sm:$0xf]
    %v149 = vld [vmem:[#allocation7 + $0x2c] sm:$0xf]
    %v150 = vld [vmem:[#allocation7 + $0x30] sm:$0xf]
    %v151 = vld [vmem:[#allocation7 + $0x34] sm:$0xf]
    %v152 = vld [vmem:[#allocation7 + $0x38] sm:$0xf]
    %v153 = vld [vmem:[#allocation7 + $0x3c] sm:$0xf]
    %v154 = vld [vmem:[%s4] sm:$0x1]
    %v156 = vlaneseq
    %v157 = vshrl.u32 %v156, 7
    %v158 = vsub.s32 0, %v157
    %v159 = vrot.slane %v154, %v158
    %v177 = vunpack.c.l.b16 %v138
    %v178 = vunpack.c.l.b16 %v139
    %v179 = vunpack.c.l.b16 %v140
    %v180 = vunpack.c.l.b16 %v141
    %v181 = vunpack.c.l.b16 %v142
    %v182 = vunpack.c.l.b16 %v143
    %v183 = vunpack.c.l.b16 %v144
    %v184 = vunpack.c.l.b16 %v145
    %v185 = vunpack.c.l.b16 %v146
    %v186 = vunpack.c.l.b16 %v147
    %v187 = vunpack.c.l.b16 %v148
    %v188 = vunpack.c.l.b16 %v149
    %v189 = vunpack.c.l.b16 %v150
    %v190 = vunpack.c.l.b16 %v151
    %v191 = vunpack.c.l.b16 %v152
    %v192 = vunpack.c.l.b16 %v153
    %v193 = vpack.c.b16 %v178, %v177
    %v194 = vpack.c.b16 %v180, %v179
    %v195 = vpack.c.b16 %v182, %v181
    %v196 = vpack.c.b16 %v184, %v183
    %v197 = vpack.c.b16 %v186, %v185
    %v198 = vpack.c.b16 %v188, %v187
    %v199 = vpack.c.b16 %v190, %v189
    %v200 = vpack.c.b16 %v192, %v191
    %209 = vmatprep.subr.bf16.mxu0 0
    %210 = vmatpush1.bf16.msra.mxu0 %v193
    %211 = vmatprep.subr.bf16.mxu0 0
    %212 = vmatpush1.bf16.msra.mxu0 %v194
    %213 = vmatprep.subr.bf16.mxu0 0
    %214 = vmatpush1.bf16.msra.mxu0 %v195
    %215 = vmatprep.subr.bf16.mxu0 0
    %216 = vmatpush1.bf16.msra.mxu0 %v196
    %217 = vmatprep.subr.bf16.mxu0 0
    %218 = vmatpush1.bf16.msra.mxu0 %v197
    %219 = vmatprep.subr.bf16.mxu0 0
    %220 = vmatpush1.bf16.msra.mxu0 %v198
    %221 = vmatprep.subr.bf16.mxu0 0
    %222 = vmatpush1.bf16.msra.mxu0 %v199
    %223 = vmatprep.subr.bf16.mxu0 0
    %224 = vmatpush1.bf16.msra.mxu0 %v200
    %225 = vmatprep.subr.bf16.mxu0 0
    %226 = vmatpush1.bf16.msra.mxu0 0
    %227 = vmatprep.subr.bf16.mxu0 0
    %228 = vmatpush1.bf16.msra.mxu0 0
    %229 = vmatprep.subr.bf16.mxu0 0
    %230 = vmatpush1.bf16.msra.mxu0 0
    %231 = vmatprep.subr.bf16.mxu0 0
    %232 = vmatpush1.bf16.msra.mxu0 0
    %233 = vmatprep.subr.bf16.mxu0 0
    %234 = vmatpush1.bf16.msra.mxu0 0
    %235 = vmatprep.subr.bf16.mxu0 0
    %236 = vmatpush1.bf16.msra.mxu0 0
    %237 = vmatprep.subr.bf16.mxu0 0
    %238 = vmatpush1.bf16.msra.mxu0 0
    %239 = vmatprep.subr.bf16.mxu0 0
    %240 = vmatpush1.bf16.msra.mxu0 0
    %241 = vmatprep.mubr.bf16.mxu0 0
    %242 = vmatmul.mubr.bf16.gmra.mrb[0].mxu0 %v137
    %v243 = vpop.f32.mrb[0].mxu0
    %v244 = vadd.f32 %v159, %v243
    %v245 = vpop.f32.mrb[0].mxu0
    %v246 = vpop.f32.mrb[0].mxu0
    %v247 = vpop.f32.mrb[0].mxu0
    %248 = vdwg.mxu0
    %v249 = vmax.f32 %v244, 0.0
    %v250 = vld [vmem:[%s5] sm:$0x1]
    %v252 = vlaneseq
    %v253 = vshrl.u32 %v252, 7
    %v254 = vsub.s32 0, %v253
    %v255 = vrot.slane %v250, %v254
    %v257 = vmul.f32 %v249, %v255
    %258 = vadd.xlane.f32.xlu0 %v257
    %v259 = vpop.xlane.xlu0 %258
    %v260 = vld [vmem:[#allocation2] sm:$0x1]
    %v262 = vlaneseq
    %v263 = vshrl.u32 %v262, 7
    %v264 = vsub.s32 0, %v263
    %v265 = vrot.slane %v260, %v264
    %v267 = vadd.f32 %v259, %v265
    %vm268 = vcmask 7168
    %269 = vst.msk [vmem:[%s7] sm:$0xff] %vm268, %v267
    // Predicated region
    $region42: #{tpu_custom_call.1} parent=1 // pred_check
      _
    $region43: #{tpu_custom_call.1} parent=1 // pred_check_branch
      %271 = sbr.rel (0) target = $region45
    $region44: #{tpu_custom_call.1} parent=1 // pred_region
      _
    $region45: #{tpu_custom_call.1} parent=1 // pred_fallthru
      _
    // Predicated region
    $region46: #{tpu_custom_call.1} parent=1 // pred_check
      _
    $region47: #{tpu_custom_call.1} parent=1 // pred_check_branch
      %273 = sbr.rel (0) target = $region49
    $region48: #{tpu_custom_call.1} parent=1 // pred_region
      _
    $region49: #{tpu_custom_call.1} parent=1 // pred_fallthru
      _
    %274 = vsyncpa [#allocation4], 1
    %275 = vsyncpa [#allocation6], 1

</llo_original>
